<compile_context>
chip_gen: v7x
topology: tpu7x:2x2x1
jax: 0.10.0
libtpu: 0.0.40
codegen_flags: <defaults>
</compile_context>

<pallas_src>
import functools

import numpy as np
import jax
import jax.numpy as jnp
from jax.experimental import pallas as pl
from jax.experimental.pallas import tpu as pltpu


def _round_up(x: int, m: int) -> int:
    return ((x + m - 1) // m) * m


def _default_block_rows() -> int:
    """Per-generation row-tile target for the (rows, 1024) f32 EMA slab.

    (block_rows, 1024) f32 = block_rows * 4 KiB per buffer; 3 slab arrays
    double-buffered:
      - 1024 rows -> ~24 MiB total VMEM: fits the 32 MiB default scoped VMEM
        on v6e / v7x (well under v7x's 64 MiB physical VMEM).
      - 512 rows  -> ~12 MiB total VMEM: fits v5e's 16 MiB default scoped VMEM.
    """
    try:
        kind = jax.devices()[0].device_kind.lower()
    except Exception:
        return 512
    if "v5 lite" in kind or "v5e" in kind or "v5lite" in kind:
        return 512
    return 1024


# -----------------------------------------------------------------------------
# Pallas kernel 1: fused EMA blend over the parameter slab
#   out = decay * ema + (1 - decay) * new
#   coeffs (SMEM): [decay, 1 - decay] as runtime f32 scalars.
# -----------------------------------------------------------------------------
def _ema_kernel(coeff_ref, ema_ref, new_ref, out_ref):
    out_ref[...] = coeff_ref[0] * ema_ref[...] + coeff_ref[1] * new_ref[...]


def fused_ema_update(coeffs, ema_slab, new_slab, *, block_rows):
    """coeffs: (2,) f32; ema_slab, new_slab: (rows, lane) f32. In-place EMA."""
    rows, lane = ema_slab.shape
    assert rows % block_rows == 0, (rows, block_rows)
    return pl.pallas_call(
        _ema_kernel,
        out_shape=jax.ShapeDtypeStruct((rows, lane), jnp.float32),
        grid=(rows // block_rows,),
        in_specs=[
            pl.BlockSpec(memory_space=pltpu.MemorySpace.SMEM),   # coeffs
            pl.BlockSpec((block_rows, lane), lambda i: (i, 0)),  # ema
            pl.BlockSpec((block_rows, lane), lambda i: (i, 0)),  # new
        ],
        out_specs=pl.BlockSpec((block_rows, lane), lambda i: (i, 0)),
        input_output_aliases={1: 0},   # update EMA slab in place
        compiler_params=pltpu.CompilerParams(
            dimension_semantics=("parallel",),  # v7x: 2 TCs split the row grid
        ),
    )(coeffs, ema_slab, new_slab)


# -----------------------------------------------------------------------------
# Pallas kernel 2: stand-in model forward (Linear: y = x @ W + b)
#   - x and W arrive pre-padded and already bf16 (no in-kernel casts),
#     f32 accumulation on the MXU; bias is f32.
# -----------------------------------------------------------------------------
def _linear_kernel(x_ref, w_ref, b_ref, o_ref):
    o_ref[...] = (
        jnp.dot(x_ref[...], w_ref[...], preferred_element_type=jnp.float32)
        + b_ref[...]
    )


@functools.partial(jax.jit, static_argnums=(3,))
def _linear_forward(x2d, w_pad_bf16, b_pad_f32, d_out):
    """x2d: [N, D_in] (any float dtype); W pre-padded bf16 [din_p, dout_p]."""
    n, d_in = x2d.shape
    din_p, dout_p = w_pad_bf16.shape
    n_p = max(8, _round_up(n, 8))
    x_p = jnp.zeros((n_p, din_p), jnp.bfloat16)
    x_p = x_p.at[:n, :d_in].set(x2d.astype(jnp.bfloat16))

    # TODO(synk): for large D_IN / D_OUT, switch to a tm/tn/tk grid with an f32
    # VMEM accumulator (256-aligned tiles on v6e/v7x, 128 on v5e); single-block
    # is fine at toy size.
    out = pl.pallas_call(
        _linear_kernel,
        out_shape=jax.ShapeDtypeStruct((n_p, dout_p), jnp.float32),
        in_specs=[
            pl.BlockSpec((n_p, din_p), lambda: (0, 0)),
            pl.BlockSpec((din_p, dout_p), lambda: (0, 0)),
            pl.BlockSpec((1, dout_p), lambda: (0, 0)),
        ],
        out_specs=pl.BlockSpec((n_p, dout_p), lambda: (0, 0)),
    )(x_p, w_pad_bf16, b_pad_f32)
    return out[:n, :d_out]


# -----------------------------------------------------------------------------
# EMAWrapper in JAX: persistent f32 slab holding all EMA parameters.
# -----------------------------------------------------------------------------
class EMAWrapper:
    LANE = 1024   # wide lane dim -> long unmasked stores / long DMA rows

    def __init__(self, model_params: dict, decay: float = 0.9999):
        self.decay = float(decay)
        self._keys = list(model_params.keys())
        self._shapes = {k: tuple(np.shape(model_params[k])) for k in self._keys}
        self._dtypes = {k: jnp.asarray(model_params[k]).dtype for k in self._keys}
        self._sizes = {k: int(np.prod(self._shapes[k])) for k in self._keys}
        self._offsets = {}
        off = 0
        for k in self._keys:
            self._offsets[k] = off
            off += self._sizes[k]
        self._total = off

        # TODO(synk): all params here are float; integer buffers (e.g. BatchNorm
        # num_batches_tracked in resnet50) must be copied, not EMA-blended.

        block_target = _default_block_rows()
        rows = max(8, _round_up(pl.cdiv(self._total, self.LANE), 8))
        self._block_rows = min(block_target, rows)
        # No partial final tile; grid = rows // block_rows exactly.
        self._rows = _round_up(rows, self._block_rows)
        self._padded = self._rows * self.LANE

        # deepcopy equivalent: pack a fresh persistent f32 slab.
        self.slab = self._pack(model_params)
        self._fwd_cache = None

        # Donate the old EMA slab; the repacked new slab is jit-internal.
        self._update_fn = jax.jit(self._update_impl, donate_argnums=(0,))

    # --- slab packing / unpacking -------------------------------------------
    def _pack(self, params: dict) -> jax.Array:
        flats = [jnp.ravel(jnp.asarray(params[k])).astype(jnp.float32)
                 for k in self._keys]
        flat = jnp.concatenate(flats) if len(flats) > 1 else flats[0]
        flat = jnp.pad(flat, (0, self._padded - self._total))
        return flat.reshape(self._rows, self.LANE)

    def _update_impl(self, ema_slab, coeffs, *flat_params):
        # Live-model repack traced INSIDE jit: ravel/concat/pad/reshape fuse
        # with the Pallas call; no eager per-tensor dispatch, no persistent
        # new_slab allocation.
        flats = [jnp.ravel(p).astype(jnp.float32) for p in flat_params]
        flat = jnp.concatenate(flats) if len(flats) > 1 else flats[0]
        flat = jnp.pad(flat, (0, self._padded - self._total))
        new_slab = flat.reshape(self._rows, self.LANE)
        return fused_ema_update(coeffs, ema_slab, new_slab,
                                block_rows=self._block_rows)

    def _unpack(self) -> dict:
        flat = self.slab.reshape(-1)
        out = {}
        for k in self._keys:
            off, sz = self._offsets[k], self._sizes[k]
            out[k] = flat[off:off + sz].reshape(self._shapes[k]).astype(
                self._dtypes[k])
        return out

    @property
    def params(self) -> dict:
        return self._unpack()

    # --- torch-equivalent API -----------------------------------------------
    def update(self, model_params: dict, decay: float | None = None):
        d = self.decay if decay is None else float(decay)
        coeffs = jnp.asarray([d, 1.0 - d], dtype=jnp.float32)  # runtime scalars
        vals = [jnp.asarray(model_params[k]) for k in self._keys]
        self.slab = self._update_fn(self.slab, coeffs, *vals)  # one fused call
        self._fwd_cache = None

    def set(self, model_params: dict):
        self.slab = self._pack(model_params)
        self._fwd_cache = None

    # --- forward --------------------------------------------------------------
    def _forward_weights(self):
        # Unpack + pad + bf16-cast ONCE per update()/set(), not per forward()
        # (avoids a full-slab HBM pass and per-tensor dispatch every call).
        if self._fwd_cache is None:
            p = self._unpack()
            w = jnp.asarray(p["weight"], jnp.float32)
            b = jnp.asarray(p["bias"], jnp.float32)
            d_in, d_out = w.shape
            din_p = _round_up(d_in, 128)
            dout_p = _round_up(d_out, 128)
            w_pad = jnp.zeros((din_p, dout_p), jnp.bfloat16)
            w_pad = w_pad.at[:d_in, :d_out].set(w.astype(jnp.bfloat16))
            b_pad = jnp.zeros((1, dout_p), jnp.float32)
            b_pad = b_pad.at[0, :d_out].set(b)
            self._fwd_cache = (w_pad, b_pad, int(d_out))
        return self._fwd_cache

    def forward(self, x_nchw: jax.Array) -> jax.Array:
        # NCHW input flattened to [N, C*H*W], Linear applied in a Pallas kernel.
        # NOTE: forward uses bf16 MXU operands (precision change vs f32 nn.Linear).
        n = x_nchw.shape[0]
        x2d = x_nchw.reshape(n, -1)
        w_pad, b_pad, d_out = self._forward_weights()
        return _linear_forward(x2d, w_pad, b_pad, d_out)

    __call__ = forward

    def state_dict(self):
        return self._unpack()

    def load_state_dict(self, state_dict):
        self.set(state_dict)


# -----------------------------------------------------------------------------
# Main
# -----------------------------------------------------------------------------
if __name__ == "__main__":
    key = jax.random.PRNGKey(0)
    k_x, k_w, k_b, k_dw, k_db = jax.random.split(key, 5)

    # Small shapes: x is NCHW [2, 4, 16, 16]; stand-in Linear(1024 -> 32).
    N, C, H, W = 2, 4, 16, 16
    D_IN, D_OUT = C * H * W, 32

    x = jax.random.normal(k_x, (N, C, H, W), dtype=jnp.float32)

    model_params = {
        "weight": jax.random.normal(k_w, (D_IN, D_OUT), dtype=jnp.float32) * 0.02,
        "bias": jax.random.normal(k_b, (D_OUT,), dtype=jnp.float32) * 0.01,
    }

    # EMA wrapper holds a deep copy (f32 slab) of the model parameters.
    ema = EMAWrapper(model_params, decay=0.9999)

    # Simulate a training step changing the live model's params, then EMA-update.
    updated_params = {
        "weight": model_params["weight"]
        + jax.random.normal(k_dw, (D_IN, D_OUT), dtype=jnp.float32) * 0.01,
        "bias": model_params["bias"]
        + jax.random.normal(k_db, (D_OUT,), dtype=jnp.float32) * 0.01,
    }
    ema.update(updated_params)
    jax.block_until_ready(ema.slab)

    # Reference check for the EMA blend (pure JAX).
    d = 0.9999
    ema_params = ema.params
    for k in model_params:
        ref = d * model_params[k] + (1.0 - d) * updated_params[k]
        assert np.allclose(np.asarray(ema_params[k]), np.asarray(ref),
                           atol=1e-6), k

    # Forward pass through the EMA model (Pallas bf16-MXU matmul kernel).
    y = ema(x)
    y = jax.block_until_ready(y)

    # Reference check for the forward (bf16 operands, f32 accumulation).
    x2d = x.reshape(N, -1)
    y_ref = jnp.dot(
        x2d.astype(jnp.bfloat16).astype(jnp.float32),
        ema_params["weight"].astype(jnp.bfloat16).astype(jnp.float32),
        precision=jax.lax.Precision.HIGHEST,
    ) + ema_params["bias"]
    assert y.shape == (N, D_OUT)
    assert np.allclose(np.asarray(y), np.asarray(y_ref), atol=2e-4)

    print("KERNEL_OK")
</pallas_src>

<mosaic_0001>
module attributes {stable_mosaic.version = 11 : i64} {
  func.func @_ema_kernel(%arg0: i32, %arg1: memref<2xf32, #tpu.memory_space<smem>>, %arg2: memref<40x1024xf32, #tpu.memory_space<vmem>>, %arg3: memref<40x1024xf32, #tpu.memory_space<vmem>>, %arg4: memref<40x1024xf32, #tpu.memory_space<vmem>>) attributes {dimension_semantics = [#tpu.dimension_semantics<parallel>], iteration_bounds = array<i64: 1>, scalar_prefetch = 0 : i64, scratch_operands = 0 : i64, tpu.core_type = #tpu.core_type<tc>, window_params = [{transform_indices = @transform_0, window_bounds = array<i64: 2>}, {transform_indices = @transform_1, window_bounds = array<i64: 40, 1024>}, {transform_indices = @transform_2, window_bounds = array<i64: 40, 1024>}, {transform_indices = @transform_3, window_bounds = array<i64: 40, 1024>}]} {
    %c0 = arith.constant 0 : index
    %0 = memref.load %arg1[%c0] : memref<2xf32, #tpu.memory_space<smem>>
    %c0_0 = arith.constant 0 : index
    %c0_1 = arith.constant 0 : index
    %1 = vector.load %arg2[%c0_0, %c0_1] : memref<40x1024xf32, #tpu.memory_space<vmem>>, vector<40x1024xf32>
    %2 = vector.broadcast %0 : f32 to vector<40x1024xf32>
    %3 = arith.mulf %2, %1 : vector<40x1024xf32>
    %c1 = arith.constant 1 : index
    %4 = memref.load %arg1[%c1] : memref<2xf32, #tpu.memory_space<smem>>
    %c0_2 = arith.constant 0 : index
    %c0_3 = arith.constant 0 : index
    %5 = vector.load %arg3[%c0_2, %c0_3] : memref<40x1024xf32, #tpu.memory_space<vmem>>, vector<40x1024xf32>
    %6 = vector.broadcast %4 : f32 to vector<40x1024xf32>
    %7 = arith.mulf %6, %5 : vector<40x1024xf32>
    %8 = arith.addf %3, %7 : vector<40x1024xf32>
    %c0_4 = arith.constant 0 : index
    %c0_5 = arith.constant 0 : index
    %9 = vector.load %arg4[%c0_4, %c0_5] : memref<40x1024xf32, #tpu.memory_space<vmem>>, vector<40x1024xf32>
    tpu.vector_store %arg4[%c0_4, %c0_5], %8 {strides = array<i32>} : memref<40x1024xf32, #tpu.memory_space<vmem>>, vector<40x1024xf32>,
    return
  }
  func.func @transform_0(%arg0: i32) -> i32 {
    %c0_i32 = arith.constant 0 : i32
    %c0_i32_0 = arith.constant 0 : i32
    return %c0_i32 : i32
  }
  func.func @transform_1(%arg0: i32) -> (i32, i32) {
    %c0_i32 = arith.constant 0 : i32
    %c0_i32_0 = arith.constant 0 : i32
    return %arg0, %c0_i32 : i32, i32
  }
  func.func @transform_2(%arg0: i32) -> (i32, i32) {
    %c0_i32 = arith.constant 0 : i32
    %c0_i32_0 = arith.constant 0 : i32
    return %arg0, %c0_i32 : i32, i32
  }
  func.func @transform_3(%arg0: i32) -> (i32, i32) {
    %c0_i32 = arith.constant 0 : i32
    %c0_i32_0 = arith.constant 0 : i32
    return %arg0, %c0_i32 : i32, i32
  }
}

</mosaic_0001>

<llo_original>
// kernel: _update_impl.1
$region0: #{_update_impl.1}
  #allocation0 [shape = 'u32[]', space=smem, size = 0x4, offset = 0x4, fixed_abs, tag = 'smem constant byte address 0x4 - core index']
  #allocation1 [shape = 'u32[144,128]{1,0:T(1,128)}', space=vmem, size = 0x12000, scoped, tag = 'internal scratch']
  %s0 = inlined_call_operand.vmem [shape: f32[2], index: 0, kind: input, shape index: {}]
  %s1 = inlined_call_operand.hbm [shape: f32[40,1024], index: 1, kind: input, shape index: {}, may-alias: {1,3}]
  %s2 = inlined_call_operand.vmem [shape: f32[40,1024], index: 2, kind: input, shape index: {}]
  %s3 = inlined_call_operand.hbm [shape: f32[40,1024], index: 3, kind: output, shape index: {}, may-alias: {1,3}]
  %s4 = sld [smem:[#allocation0]]
  $region30: #{_update_impl.1} parent=0
    _
  %s6 = ssub.s32 1, %s4
  %s7 = scalar_select 0, %s6, %s4
  $region1: #{_update_impl.1} parent=0
    #allocation2 [shape = 'u8[512]{0}', space=smem, size = 0x200, scoped, tag = 'input window, operand 0, single buffered']
    #allocation3 [shape = 's32[1]{0}', space=sflag, size = 0x4, scoped, tag = 'scoped memory for _update_impl.1']
    #allocation4 [shape = 's32[1]{0}', space=sflag, size = 0x4, scoped, tag = 'scoped memory for _update_impl.1']
    #allocation5 [shape = 's32[1]{0}', space=sflag, size = 0x4, scoped, tag = 'scoped memory for _update_impl.1']
    #allocation6 [shape = 'u8[163840]{0}', space=vmem, size = 0x28000, scoped, tag = 'input window, operand 1, single buffered']
    #allocation7 [shape = 'u8[163840]{0}', space=vmem, size = 0x28000, scoped, tag = 'output window, operand 0, single buffered']
    %8 = vsyncpa [#allocation5], 0
    %9 = vsyncpa [#allocation3], 0
    %10 = vsyncpa [#allocation4], 0
    // Predicated region
    $region2: #{_update_impl.1} parent=1 // pred_check
      _
    $region3: #{_update_impl.1} parent=1 // pred_check_branch
      %12 = sbr.rel (0) target = $region5
    $region4: #{_update_impl.1} parent=1 // pred_region
      %s14 = ssub.s32 16, 16
      %15 = vsyncadd [#allocation5], %s14
      %s17 = sshll.u32 %s0, 4
      %s18 = int_to_ptr.vmem [resolvable:$true] %s17
      %20 = dma.vmem_to_smem %s18, 16, [#allocation2], [#allocation5]
    $region5: #{_update_impl.1} parent=1 // pred_fallthru
      _
    // Predicated region
    $region6: #{_update_impl.1} parent=1 // pred_check
      _
    $region7: #{_update_impl.1} parent=1 // pred_check_branch
      %22 = sbr.rel (0) target = $region9
    $region8: #{_update_impl.1} parent=1 // pred_region
      %s24 = ssub.s32 5120, 5120
      %25 = vsyncadd [#allocation3], %s24
      %s26 = sshll.u32 [#allocation6], 4
      %s27 = int_to_ptr.vmem [resolvable:$true] %s26
      %32 = dma.hbm_to_vmem [thread:$0]  %s1, 5120, %s27, [#allocation3], 1024, 1024, 64
    $region9: #{_update_impl.1} parent=1 // pred_fallthru
      _
    // Predicated region
    $region10: #{_update_impl.1} parent=1 // pred_check
      _
    $region11: #{_update_impl.1} parent=1 // pred_check_branch
      %34 = sbr.rel (0) target = $region13
    $region12: #{_update_impl.1} parent=1 // pred_region
      _
    $region13: #{_update_impl.1} parent=1 // pred_fallthru
      _
    // Predicated region
    $region14: #{_update_impl.1} parent=1 // pred_check
      _
    $region15: #{_update_impl.1} parent=1 // pred_check_branch
      %36 = sbr.rel (0) target = $region17
    $region16: #{_update_impl.1} parent=1 // pred_region
      %37 = dma.done [#allocation5], 16
    $region17: #{_update_impl.1} parent=1 // pred_fallthru
      _
    // Predicated region
    $region18: #{_update_impl.1} parent=1 // pred_check
      _
    $region19: #{_update_impl.1} parent=1 // pred_check_branch
      %39 = sbr.rel (0) target = $region21
    $region20: #{_update_impl.1} parent=1 // pred_region
      %40 = dma.done [#allocation3], 5120
    $region21: #{_update_impl.1} parent=1 // pred_fallthru
      _
    %41 = sfence
    %s42 = sld [smem:[#allocation2]]
    %v43 = vld [vmem:[#allocation6] sm:$0xff]
    %v44 = vld [vmem:[#allocation6 + $0x8] sm:$0xff]
    %v45 = vld [vmem:[#allocation6 + $0x10] sm:$0xff]
    %v46 = vld [vmem:[#allocation6 + $0x18] sm:$0xff]
    %v47 = vld [vmem:[#allocation6 + $0x20] sm:$0xff]
    %v48 = vld [vmem:[#allocation6 + $0x28] sm:$0xff]
    %v49 = vld [vmem:[#allocation6 + $0x30] sm:$0xff]
    %v50 = vld [vmem:[#allocation6 + $0x38] sm:$0xff]
    %v51 = vld [vmem:[#allocation6 + $0x40] sm:$0xff]
    %v52 = vld [vmem:[#allocation6 + $0x48] sm:$0xff]
    %v53 = vld [vmem:[#allocation6 + $0x50] sm:$0xff]
    %v54 = vld [vmem:[#allocation6 + $0x58] sm:$0xff]
    %v55 = vld [vmem:[#allocation6 + $0x60] sm:$0xff]
    %v56 = vld [vmem:[#allocation6 + $0x68] sm:$0xff]
    %v57 = vld [vmem:[#allocation6 + $0x70] sm:$0xff]
    %v58 = vld [vmem:[#allocation6 + $0x78] sm:$0xff]
    %v59 = vld [vmem:[#allocation6 + $0x80] sm:$0xff]
    %v60 = vld [vmem:[#allocation6 + $0x88] sm:$0xff]
    %v61 = vld [vmem:[#allocation6 + $0x90] sm:$0xff]
    %v62 = vld [vmem:[#allocation6 + $0x98] sm:$0xff]
    %v63 = vld [vmem:[#allocation6 + $0xa0] sm:$0xff]
    %v64 = vld [vmem:[#allocation6 + $0xa8] sm:$0xff]
    %v65 = vld [vmem:[#allocation6 + $0xb0] sm:$0xff]
    %v66 = vld [vmem:[#allocation6 + $0xb8] sm:$0xff]
    %v67 = vld [vmem:[#allocation6 + $0xc0] sm:$0xff]
    %v68 = vld [vmem:[#allocation6 + $0xc8] sm:$0xff]
    %v69 = vld [vmem:[#allocation6 + $0xd0] sm:$0xff]
    %v70 = vld [vmem:[#allocation6 + $0xd8] sm:$0xff]
    %v71 = vld [vmem:[#allocation6 + $0xe0] sm:$0xff]
    %v72 = vld [vmem:[#allocation6 + $0xe8] sm:$0xff]
    %v73 = vld [vmem:[#allocation6 + $0xf0] sm:$0xff]
    %v74 = vld [vmem:[#allocation6 + $0xf8] sm:$0xff]
    %v75 = vld [vmem:[#allocation6 + $0x100] sm:$0xff]
    %v76 = vld [vmem:[#allocation6 + $0x108] sm:$0xff]
    %v77 = vld [vmem:[#allocation6 + $0x110] sm:$0xff]
    %v78 = vld [vmem:[#allocation6 + $0x118] sm:$0xff]
    %v79 = vld [vmem:[#allocation6 + $0x120] sm:$0xff]
    %v80 = vld [vmem:[#allocation6 + $0x128] sm:$0xff]
    %v81 = vld [vmem:[#allocation6 + $0x130] sm:$0xff]
    %v82 = vld [vmem:[#allocation6 + $0x138] sm:$0xff]
    %v83 = vstv %s42
    %v84 = vmul.f32 %v83, %v43
    %v85 = vmul.f32 %v83, %v44
    %v86 = vmul.f32 %v83, %v45
    %v87 = vmul.f32 %v83, %v46
    %v88 = vmul.f32 %v83, %v47
    %v89 = vmul.f32 %v83, %v48
    %v90 = vmul.f32 %v83, %v49
    %v91 = vmul.f32 %v83, %v50
    %v92 = vmul.f32 %v83, %v51
    %v93 = vmul.f32 %v83, %v52
    %v94 = vmul.f32 %v83, %v53
    %v95 = vmul.f32 %v83, %v54
    %v96 = vmul.f32 %v83, %v55
    %v97 = vmul.f32 %v83, %v56
    %v98 = vmul.f32 %v83, %v57
    %v99 = vmul.f32 %v83, %v58
    %v100 = vmul.f32 %v83, %v59
    %v101 = vmul.f32 %v83, %v60
    %v102 = vmul.f32 %v83, %v61
    %v103 = vmul.f32 %v83, %v62
    %v104 = vmul.f32 %v83, %v63
    %v105 = vmul.f32 %v83, %v64
    %v106 = vmul.f32 %v83, %v65
    %v107 = vmul.f32 %v83, %v66
    %v108 = vmul.f32 %v83, %v67
    %v109 = vmul.f32 %v83, %v68
    %v110 = vmul.f32 %v83, %v69
    %v111 = vmul.f32 %v83, %v70
    %v112 = vmul.f32 %v83, %v71
    %v113 = vmul.f32 %v83, %v72
    %v114 = vmul.f32 %v83, %v73
    %v115 = vmul.f32 %v83, %v74
    %v116 = vmul.f32 %v83, %v75
    %v117 = vmul.f32 %v83, %v76
    %v118 = vmul.f32 %v83, %v77
    %v119 = vmul.f32 %v83, %v78
    %v120 = vmul.f32 %v83, %v79
    %v121 = vmul.f32 %v83, %v80
    %v122 = vmul.f32 %v83, %v81
    %v123 = vmul.f32 %v83, %v82
    %s124 = sld [smem:[#allocation2 + $0x1]]
    %v125 = vld [vmem:[%s2] sm:$0xff]
    %v126 = vld [vmem:[%s2 + $0x8] sm:$0xff]
    %v127 = vld [vmem:[%s2 + $0x10] sm:$0xff]
    %v128 = vld [vmem:[%s2 + $0x18] sm:$0xff]
    %v129 = vld [vmem:[%s2 + $0x20] sm:$0xff]
    %v130 = vld [vmem:[%s2 + $0x28] sm:$0xff]
    %v131 = vld [vmem:[%s2 + $0x30] sm:$0xff]
    %v132 = vld [vmem:[%s2 + $0x38] sm:$0xff]
    %v133 = vld [vmem:[%s2 + $0x40] sm:$0xff]
    %v134 = vld [vmem:[%s2 + $0x48] sm:$0xff]
    %v135 = vld [vmem:[%s2 + $0x50] sm:$0xff]
    %v136 = vld [vmem:[%s2 + $0x58] sm:$0xff]
    %v137 = vld [vmem:[%s2 + $0x60] sm:$0xff]
    %v138 = vld [vmem:[%s2 + $0x68] sm:$0xff]
    %v139 = vld [vmem:[%s2 + $0x70] sm:$0xff]
    %v140 = vld [vmem:[%s2 + $0x78] sm:$0xff]
    %v141 = vld [vmem:[%s2 + $0x80] sm:$0xff]
    %v142 = vld [vmem:[%s2 + $0x88] sm:$0xff]
    %v143 = vld [vmem:[%s2 + $0x90] sm:$0xff]
    %v144 = vld [vmem:[%s2 + $0x98] sm:$0xff]
    %v145 = vld [vmem:[%s2 + $0xa0] sm:$0xff]
    %v146 = vld [vmem:[%s2 + $0xa8] sm:$0xff]
    %v147 = vld [vmem:[%s2 + $0xb0] sm:$0xff]
    %v148 = vld [vmem:[%s2 + $0xb8] sm:$0xff]
    %v149 = vld [vmem:[%s2 + $0xc0] sm:$0xff]
    %v150 = vld [vmem:[%s2 + $0xc8] sm:$0xff]
    %v151 = vld [vmem:[%s2 + $0xd0] sm:$0xff]
    %v152 = vld [vmem:[%s2 + $0xd8] sm:$0xff]
    %v153 = vld [vmem:[%s2 + $0xe0] sm:$0xff]
    %v154 = vld [vmem:[%s2 + $0xe8] sm:$0xff]
    %v155 = vld [vmem:[%s2 + $0xf0] sm:$0xff]
    %v156 = vld [vmem:[%s2 + $0xf8] sm:$0xff]
    %v157 = vld [vmem:[%s2 + $0x100] sm:$0xff]
    %v158 = vld [vmem:[%s2 + $0x108] sm:$0xff]
    %v159 = vld [vmem:[%s2 + $0x110] sm:$0xff]
    %v160 = vld [vmem:[%s2 + $0x118] sm:$0xff]
    %v161 = vld [vmem:[%s2 + $0x120] sm:$0xff]
    %v162 = vld [vmem:[%s2 + $0x128] sm:$0xff]
    %v163 = vld [vmem:[%s2 + $0x130] sm:$0xff]
    %v164 = vld [vmem:[%s2 + $0x138] sm:$0xff]
    %v165 = vstv %s124
    %v166 = vmul.f32 %v165, %v125
    %v167 = vmul.f32 %v165, %v126
    %v168 = vmul.f32 %v165, %v127
    %v169 = vmul.f32 %v165, %v128
    %v170 = vmul.f32 %v165, %v129
    %v171 = vmul.f32 %v165, %v130
    %v172 = vmul.f32 %v165, %v131
    %v173 = vmul.f32 %v165, %v132
    %v174 = vmul.f32 %v165, %v133
    %v175 = vmul.f32 %v165, %v134
    %v176 = vmul.f32 %v165, %v135
    %v177 = vmul.f32 %v165, %v136
    %v178 = vmul.f32 %v165, %v137
    %v179 = vmul.f32 %v165, %v138
    %v180 = vmul.f32 %v165, %v139
    %v181 = vmul.f32 %v165, %v140
    %v182 = vmul.f32 %v165, %v141
    %v183 = vmul.f32 %v165, %v142
    %v184 = vmul.f32 %v165, %v143
    %v185 = vmul.f32 %v165, %v144
    %v186 = vmul.f32 %v165, %v145
    %v187 = vmul.f32 %v165, %v146
    %v188 = vmul.f32 %v165, %v147
    %v189 = vmul.f32 %v165, %v148
    %v190 = vmul.f32 %v165, %v149
    %v191 = vmul.f32 %v165, %v150
    %v192 = vmul.f32 %v165, %v151
    %v193 = vmul.f32 %v165, %v152
    %v194 = vmul.f32 %v165, %v153
    %v195 = vmul.f32 %v165, %v154
    %v196 = vmul.f32 %v165, %v155
    %v197 = vmul.f32 %v165, %v156
    %v198 = vmul.f32 %v165, %v157
    %v199 = vmul.f32 %v165, %v158
    %v200 = vmul.f32 %v165, %v159
    %v201 = vmul.f32 %v165, %v160
    %v202 = vmul.f32 %v165, %v161
    %v203 = vmul.f32 %v165, %v162
    %v204 = vmul.f32 %v165, %v163
    %v205 = vmul.f32 %v165, %v164
    %v206 = vadd.f32 %v84, %v166
    %v207 = vadd.f32 %v85, %v167
    %v208 = vadd.f32 %v86, %v168
    %v209 = vadd.f32 %v87, %v169
    %v210 = vadd.f32 %v88, %v170
    %v211 = vadd.f32 %v89, %v171
    %v212 = vadd.f32 %v90, %v172
    %v213 = vadd.f32 %v91, %v173
    %v214 = vadd.f32 %v92, %v174
    %v215 = vadd.f32 %v93, %v175
    %v216 = vadd.f32 %v94, %v176
    %v217 = vadd.f32 %v95, %v177
    %v218 = vadd.f32 %v96, %v178
    %v219 = vadd.f32 %v97, %v179
    %v220 = vadd.f32 %v98, %v180
    %v221 = vadd.f32 %v99, %v181
    %v222 = vadd.f32 %v100, %v182
    %v223 = vadd.f32 %v101, %v183
    %v224 = vadd.f32 %v102, %v184
    %v225 = vadd.f32 %v103, %v185
    %v226 = vadd.f32 %v104, %v186
    %v227 = vadd.f32 %v105, %v187
    %v228 = vadd.f32 %v106, %v188
    %v229 = vadd.f32 %v107, %v189
    %v230 = vadd.f32 %v108, %v190
    %v231 = vadd.f32 %v109, %v191
    %v232 = vadd.f32 %v110, %v192
    %v233 = vadd.f32 %v111, %v193
    %v234 = vadd.f32 %v112, %v194
    %v235 = vadd.f32 %v113, %v195
    %v236 = vadd.f32 %v114, %v196
    %v237 = vadd.f32 %v115, %v197
    %v238 = vadd.f32 %v116, %v198
    %v239 = vadd.f32 %v117, %v199
    %v240 = vadd.f32 %v118, %v200
    %v241 = vadd.f32 %v119, %v201
    %v242 = vadd.f32 %v120, %v202
    %v243 = vadd.f32 %v121, %v203
    %v244 = vadd.f32 %v122, %v204
    %v245 = vadd.f32 %v123, %v205
    %246 = vst [vmem:[#allocation7] sm:$0xff] %v206
    %247 = vst [vmem:[#allocation7 + $0x8] sm:$0xff] %v207
    %248 = vst [vmem:[#allocation7 + $0x10] sm:$0xff] %v208
    %249 = vst [vmem:[#allocation7 + $0x18] sm:$0xff] %v209
    %250 = vst [vmem:[#allocation7 + $0x20] sm:$0xff] %v210
    %251 = vst [vmem:[#allocation7 + $0x28] sm:$0xff] %v211
    %252 = vst [vmem:[#allocation7 + $0x30] sm:$0xff] %v212
    %253 = vst [vmem:[#allocation7 + $0x38] sm:$0xff] %v213
    %254 = vst [vmem:[#allocation7 + $0x40] sm:$0xff] %v214
    %255 = vst [vmem:[#allocation7 + $0x48] sm:$0xff] %v215
    %256 = vst [vmem:[#allocation7 + $0x50] sm:$0xff] %v216
    %257 = vst [vmem:[#allocation7 + $0x58] sm:$0xff] %v217
    %258 = vst [vmem:[#allocation7 + $0x60] sm:$0xff] %v218
    %259 = vst [vmem:[#allocation7 + $0x68] sm:$0xff] %v219
    %260 = vst [vmem:[#allocation7 + $0x70] sm:$0xff] %v220
    %261 = vst [vmem:[#allocation7 + $0x78] sm:$0xff] %v221
    %262 = vst [vmem:[#allocation7 + $0x80] sm:$0xff] %v222
    %263 = vst [vmem:[#allocation7 + $0x88] sm:$0xff] %v223
    %264 = vst [vmem:[#allocation7 + $0x90] sm:$0xff] %v224
    %265 = vst [vmem:[#allocation7 + $0x98] sm:$0xff] %v225
    %266 = vst [vmem:[#allocation7 + $0xa0] sm:$0xff] %v226
    %267 = vst [vmem:[#allocation7 + $0xa8] sm:$0xff] %v227
    %268 = vst [vmem:[#allocation7 + $0xb0] sm:$0xff] %v228
    %269 = vst [vmem:[#allocation7 + $0xb8] sm:$0xff] %v229
    %270 = vst [vmem:[#allocation7 + $0xc0] sm:$0xff] %v230
    %271 = vst [vmem:[#allocation7 + $0xc8] sm:$0xff] %v231
    %272 = vst [vmem:[#allocation7 + $0xd0] sm:$0xff] %v232
    %273 = vst [vmem:[#allocation7 + $0xd8] sm:$0xff] %v233
    %274 = vst [vmem:[#allocation7 + $0xe0] sm:$0xff] %v234
    %275 = vst [vmem:[#allocation7 + $0xe8] sm:$0xff] %v235
    %276 = vst [vmem:[#allocation7 + $0xf0] sm:$0xff] %v236
    %277 = vst [vmem:[#allocation7 + $0xf8] sm:$0xff] %v237
    %278 = vst [vmem:[#allocation7 + $0x100] sm:$0xff] %v238
    %279 = vst [vmem:[#allocation7 + $0x108] sm:$0xff] %v239
    %280 = vst [vmem:[#allocation7 + $0x110] sm:$0xff] %v240
    %281 = vst [vmem:[#allocation7 + $0x118] sm:$0xff] %v241
    %282 = vst [vmem:[#allocation7 + $0x120] sm:$0xff] %v242
    %283 = vst [vmem:[#allocation7 + $0x128] sm:$0xff] %v243
    %284 = vst [vmem:[#allocation7 + $0x130] sm:$0xff] %v244
    %285 = vst [vmem:[#allocation7 + $0x138] sm:$0xff] %v245
    // Predicated region
    $region22: #{_update_impl.1} parent=1 // pred_check
      _
    $region23: #{_update_impl.1} parent=1 // pred_check_branch
      %287 = sbr.rel (0) target = $region25
    $region24: #{_update_impl.1} parent=1 // pred_region
      %s289 = ssub.s32 5120, 5120
      %290 = vsyncadd [#allocation4], %s289
      %s291 = sshll.u32 [#allocation7], 4
      %s292 = int_to_ptr.vmem [resolvable:$true] %s291
      %297 = dma.vmem_to_hbm [thread:$0]  %s292, 5120, %s3, [#allocation4], 1024, 1024, 64
    $region25: #{_update_impl.1} parent=1 // pred_fallthru
      _
    // Predicated region
    $region26: #{_update_impl.1} parent=1 // pred_check
      _
    $region27: #{_update_impl.1} parent=1 // pred_check_branch
      %299 = sbr.rel (0) target = $region29
    $region28: #{_update_impl.1} parent=1 // pred_region
      %300 = dma.done [#allocation4], 5120
    $region29: #{_update_impl.1} parent=1 // pred_fallthru
      _
    %301 = vsyncpa [#allocation3], 1
    %302 = vsyncpa [#allocation4], 1
    %303 = vsyncpa [#allocation5], 1

</llo_original>
